<compile_context>
chip_gen: v5e
topology: v5e:2x2
jax: 0.10.0
libtpu: 0.0.40
codegen_flags: <defaults>
</compile_context>

<pallas_src>
import numpy as np

import jax
import jax.numpy as jnp
from jax.experimental import pallas as pl
from jax.experimental.pallas import tpu as pltpu

EPS = 1e-5  # nn.InstanceNorm2d default eps


def _residual_block_kernel(x_ref, t1_ref, t2_ref, g1_ref, b1_ref, g2_ref, b2_ref,
                           et2_ref, e2_ref, o_ref):
    # x_ref  : (N, H, W*C)     lane-dense input (no padding anywhere)
    # t*_ref : (3*W*C, W*C)    banded conv weights, kernel-row ky stacked along K
    # g*/b*  : (1, C)          InstanceNorm affine params
    # et2_ref: (2*W*C, 2*C)    blockdiag(E^T, E^T)   lanes -> channels
    # e2_ref : (2*C, 2*W*C)    blockdiag(E, E)       channels -> lanes
    # o_ref  : (N, H, W*C)     lane-dense output
    Nb, H, WC = x_ref.shape
    C = g1_ref.shape[-1]
    M = Nb * H
    inv_hw = 1.0 / (H * (WC // C))

    x3 = x_ref[...]            # (N, H, W*C)
    Et2 = et2_ref[...]         # (2*W*C, 2*C)
    E2 = e2_ref[...]           # (2*C, 2*W*C)

    # Per-sample row index for every flat row: realizes the H-direction zero
    # padding and also kills the cross-sample wraparound of the rolls.
    hidx = jax.lax.broadcasted_iota(jnp.int32, (Nb, H, WC), 1).reshape(M, WC)
    top = hidx == 0          # rows that must see a zero "row above"
    bot = hidx == H - 1      # rows that must see a zero "row below"

    def conv(y3, t_ref):
        # Single fat MXU matmul per conv: LHS = [x(h-1) | x(h) | x(h+1)] along lanes.
        yf = y3.reshape(M, WC)
        ydn = jnp.where(top, 0.0, pltpu.roll(yf, shift=1, axis=0))      # row h sees x[h-1]
        yup = jnp.where(bot, 0.0, pltpu.roll(yf, shift=M - 1, axis=0))  # row h sees x[h+1]
        lhs = jnp.concatenate([ydn, yf, yup], axis=-1)                  # (M, 3*W*C)
        out = jnp.dot(lhs, t_ref[...], preferred_element_type=jnp.float32)
        return out.reshape(Nb, H, WC)

    def inorm(y3, g, b):
        # Per-sample/per-channel stats: one XLU sublane reduction (replaces the
        # old L-selector matmuls) + one fused block-diagonal matmul each way.
        stats = jnp.sum(jnp.concatenate([y3, y3 * y3], axis=-1), axis=1)        # (N, 2*W*C)
        mm = jnp.dot(stats, Et2, preferred_element_type=jnp.float32) * inv_hw   # (N, 2*C)
        mean = mm[:, :C]
        var = mm[:, C:] - mean * mean                                           # one-pass, biased
        scale_c = g * jax.lax.rsqrt(var + EPS)                                  # (N, C)
        shift_c = b - mean * scale_c                                            # (N, C)
        exp = jnp.dot(jnp.concatenate([scale_c, shift_c], axis=-1), E2,
                      preferred_element_type=jnp.float32)                       # (N, 2*W*C)
        scale_d = exp[:, :WC].reshape(Nb, 1, WC)
        shift_d = exp[:, WC:].reshape(Nb, 1, WC)
        return y3 * scale_d + shift_d

    # conv1 -> IN1 -> ReLU -> conv2 -> IN2, all in vregs (no VMEM round trip)
    h1 = jnp.maximum(inorm(conv(x3, t1_ref), g1_ref[...], b1_ref[...]), 0.0)
    h2 = inorm(conv(h1, t2_ref), g2_ref[...], b2_ref[...])

    # residual add on the unpadded input slab; full-lane store
    o_ref[...] = (x3 + h2).astype(o_ref.dtype)


def _banded_weights(w_hwio, W):
    """(3, 3, Cin, Cout) HWIO -> (3*W*Cin, W*Cout) banded RHS (ky stacked along K).

    T[ky*W*Cin + w_in*Cin + ci, w*Cout + co] = w[ky, w_in - w + 1, ci, co] when
    the kernel-column index is in range, else 0 (encodes the W zero padding).
    """
    kh, kw, Cin, Cout = w_hwio.shape
    S = np.zeros((kw, W, W), dtype=np.float32)
    for kx in range(kw):
        for w in range(W):
            wi = w + kx - 1  # padding = 1
            if 0 <= wi < W:
                S[kx, wi, w] = 1.0
    t = jnp.einsum('xiw,yxcd->yicwd', jnp.asarray(S), w_hwio.astype(jnp.float32))
    return t.reshape(kh * W * Cin, W * Cout)


def make_residual_block_params(w1, g1, b1, w2, g2, b2, W):
    """One-time, parameter-load-time preprocessing (hoisted out of the hot path)."""
    C = w1.shape[2]
    WC = W * C
    E = np.tile(np.eye(C, dtype=np.float32), (1, W))      # (C, W*C): E[c, w*C+c] = 1
    Et2 = np.zeros((2 * WC, 2 * C), dtype=np.float32)     # blockdiag(E^T, E^T)
    Et2[:WC, :C] = E.T
    Et2[WC:, C:] = E.T
    E2 = np.zeros((2 * C, 2 * WC), dtype=np.float32)      # blockdiag(E, E)
    E2[:C, :WC] = E
    E2[C:, WC:] = E
    return dict(
        t1=_banded_weights(w1, W),
        t2=_banded_weights(w2, W),
        g1=g1.reshape(1, C).astype(jnp.float32),
        b1=b1.reshape(1, C).astype(jnp.float32),
        g2=g2.reshape(1, C).astype(jnp.float32),
        b2=b2.reshape(1, C).astype(jnp.float32),
        Et2=jnp.asarray(Et2),
        E2=jnp.asarray(E2),
    )


@jax.jit
def residual_block_forward(x_nchw, params):
    """x_nchw: (N, C, H, W).  The NCHW <-> lane-dense conversion is kept here
    only for this standalone test; in a full model it happens once at the
    model boundary, not per block."""
    N, C, H, W = x_nchw.shape
    WC = W * C
    assert H % 8 == 0, "row count should be a multiple of 8 for free re-tiling"
    assert WC % 128 == 0, "lane-dense width must be a multiple of 128 lanes"

    x_dense = jnp.transpose(x_nchw, (0, 2, 3, 1)).reshape(N, H, WC).astype(jnp.float32)

    out_dense = pl.pallas_call(
        _residual_block_kernel,
        out_shape=jax.ShapeDtypeStruct((N, H, WC), jnp.float32),
        grid_spec=pltpu.PrefetchScalarGridSpec(
            num_scalar_prefetch=0,
            grid=(1,),  # whole (tiny) batch in one step; split over N only on v7x at larger sizes
            in_specs=[
                pl.BlockSpec((N, H, WC), lambda i: (0, 0, 0)),
                pl.BlockSpec((3 * WC, WC), lambda i: (0, 0)),
                pl.BlockSpec((3 * WC, WC), lambda i: (0, 0)),
                pl.BlockSpec((1, C), lambda i: (0, 0)),
                pl.BlockSpec((1, C), lambda i: (0, 0)),
                pl.BlockSpec((1, C), lambda i: (0, 0)),
                pl.BlockSpec((1, C), lambda i: (0, 0)),
                pl.BlockSpec((2 * WC, 2 * C), lambda i: (0, 0)),
                pl.BlockSpec((2 * C, 2 * WC), lambda i: (0, 0)),
            ],
            out_specs=pl.BlockSpec((N, H, WC), lambda i: (0, 0, 0)),
        ),
        compiler_params=pltpu.CompilerParams(dimension_semantics=("arbitrary",)),
    )(x_dense, params["t1"], params["t2"], params["g1"], params["b1"],
      params["g2"], params["b2"], params["Et2"], params["E2"])

    out_nhwc = out_dense.reshape(N, H, W, C)
    return jnp.transpose(out_nhwc, (0, 3, 1, 2)).astype(x_nchw.dtype)


def _reference(x, w1, g1, b1, w2, g2, b2):
    """Pure-JAX reference matching PyTorch semantics (NCHW)."""
    def conv(y, w):
        return jax.lax.conv_general_dilated(
            y, w, window_strides=(1, 1), padding=((1, 1), (1, 1)),
            dimension_numbers=("NCHW", "HWIO", "NCHW"),
            precision=jax.lax.Precision.HIGHEST)

    def inorm(y, g, b):
        m = jnp.mean(y, axis=(2, 3), keepdims=True)
        v = jnp.mean((y - m) ** 2, axis=(2, 3), keepdims=True)
        yn = (y - m) * jax.lax.rsqrt(v + EPS)
        return yn * g[None, :, None, None] + b[None, :, None, None]

    h = jnp.maximum(inorm(conv(x, w1), g1, b1), 0.0)
    h = inorm(conv(h, w2), g2, b2)
    return x + h


if __name__ == "__main__":
    # Small shapes: batch=2, dim_in=dim_out=8, spatial=16x16  (W*C = 128 lanes)
    N, C, H, W = 2, 8, 16, 16
    key = jax.random.PRNGKey(0)
    kx, k1, k2, k3, k4, k5, k6 = jax.random.split(key, 7)

    x = jax.random.normal(kx, (N, C, H, W), dtype=jnp.float32)
    # PyTorch Conv2d weights are OIHW; stored here directly as HWIO.
    w1 = jax.random.normal(k1, (3, 3, C, C), dtype=jnp.float32) * 0.1
    w2 = jax.random.normal(k2, (3, 3, C, C), dtype=jnp.float32) * 0.1
    # InstanceNorm affine params (PyTorch default ones/zeros; random keeps it nontrivial).
    g1 = 1.0 + 0.1 * jax.random.normal(k3, (C,), dtype=jnp.float32)
    b1 = 0.1 * jax.random.normal(k4, (C,), dtype=jnp.float32)
    g2 = 1.0 + 0.1 * jax.random.normal(k5, (C,), dtype=jnp.float32)
    b2 = 0.1 * jax.random.normal(k6, (C,), dtype=jnp.float32)

    params = make_residual_block_params(w1, g1, b1, w2, g2, b2, W)

    out = jax.block_until_ready(residual_block_forward(x, params))
    ref = jax.block_until_ready(_reference(x, w1, g1, b1, w2, g2, b2))

    assert out.shape == ref.shape
    max_err = float(jnp.max(jnp.abs(out - ref)))
    assert jnp.allclose(out, ref, atol=2e-4, rtol=2e-4), f"max abs err {max_err}"

    print("KERNEL_OK")
</pallas_src>

<mosaic_0001>
module attributes {stable_mosaic.version = 11 : i64} {
  func.func @_residual_block_kernel(%arg0: i32, %arg1: memref<2x16x128xf32, #tpu.memory_space<vmem>>, %arg2: memref<384x128xf32, #tpu.memory_space<vmem>>, %arg3: memref<384x128xf32, #tpu.memory_space<vmem>>, %arg4: memref<1x8xf32, #tpu.memory_space<vmem>>, %arg5: memref<1x8xf32, #tpu.memory_space<vmem>>, %arg6: memref<1x8xf32, #tpu.memory_space<vmem>>, %arg7: memref<1x8xf32, #tpu.memory_space<vmem>>, %arg8: memref<256x16xf32, #tpu.memory_space<vmem>>, %arg9: memref<16x256xf32, #tpu.memory_space<vmem>>, %arg10: memref<2x16x128xf32, #tpu.memory_space<vmem>>) attributes {dimension_semantics = [#tpu.dimension_semantics<arbitrary>], iteration_bounds = array<i64: 1>, scalar_prefetch = 0 : i64, scratch_operands = 0 : i64, tpu.core_type = #tpu.core_type<tc>, window_params = [{pipeline_mode = #tpu.pipeline_mode<synchronous>, transform_indices = @transform_0, window_bounds = array<i64: 2, 16, 128>}, {pipeline_mode = #tpu.pipeline_mode<synchronous>, transform_indices = @transform_1, window_bounds = array<i64: 384, 128>}, {pipeline_mode = #tpu.pipeline_mode<synchronous>, transform_indices = @transform_2, window_bounds = array<i64: 384, 128>}, {pipeline_mode = #tpu.pipeline_mode<synchronous>, transform_indices = @transform_3, window_bounds = array<i64: 1, 8>}, {pipeline_mode = #tpu.pipeline_mode<synchronous>, transform_indices = @transform_4, window_bounds = array<i64: 1, 8>}, {pipeline_mode = #tpu.pipeline_mode<synchronous>, transform_indices = @transform_5, window_bounds = array<i64: 1, 8>}, {pipeline_mode = #tpu.pipeline_mode<synchronous>, transform_indices = @transform_6, window_bounds = array<i64: 1, 8>}, {pipeline_mode = #tpu.pipeline_mode<synchronous>, transform_indices = @transform_7, window_bounds = array<i64: 256, 16>}, {pipeline_mode = #tpu.pipeline_mode<synchronous>, transform_indices = @transform_8, window_bounds = array<i64: 16, 256>}, {pipeline_mode = #tpu.pipeline_mode<synchronous>, transform_indices = @transform_9, window_bounds = array<i64: 2, 16, 128>}]} {
    %c0 = arith.constant 0 : index
    %c0_0 = arith.constant 0 : index
    %c0_1 = arith.constant 0 : index
    %0 = vector.load %arg1[%c0, %c0_0, %c0_1] : memref<2x16x128xf32, #tpu.memory_space<vmem>>, vector<2x16x128xf32>
    %c0_2 = arith.constant 0 : index
    %c0_3 = arith.constant 0 : index
    %1 = vector.load %arg8[%c0_2, %c0_3] : memref<256x16xf32, #tpu.memory_space<vmem>>, vector<256x16xf32>
    %c0_4 = arith.constant 0 : index
    %c0_5 = arith.constant 0 : index
    %2 = vector.load %arg9[%c0_4, %c0_5] : memref<16x256xf32, #tpu.memory_space<vmem>>, vector<16x256xf32>
    %3 = tpu.iota {dimensions = array<i32: 1>} : vector<2x16x128xi32>
    %4 = vector.shape_cast %3 : vector<2x16x128xi32> to vector<32x128xi32>
    %c0_i32 = arith.constant 0 : i32
    %5 = vector.broadcast %c0_i32 : i32 to vector<32x128xi32>
    %6 = arith.cmpi eq, %4, %5 : vector<32x128xi32>
    %c15_i32 = arith.constant 15 : i32
    %7 = vector.broadcast %c15_i32 : i32 to vector<32x128xi32>
    %8 = arith.cmpi eq, %4, %7 : vector<32x128xi32>
    %9 = vector.shape_cast %0 : vector<2x16x128xf32> to vector<32x128xf32>
    %c1_i32 = arith.constant 1 : i32
    %10 = tpu.dynamic_rotate %9 by %c1_i32 dim 0 : vector<32x128xf32>, i32 -> vector<32x128xf32>
    %cst = arith.constant 0.000000e+00 : f32
    %11 = vector.broadcast %cst : f32 to vector<32x128xf32>
    %12 = arith.select %6, %11, %10 : vector<32x128xi1>, vector<32x128xf32>
    %c31_i32 = arith.constant 31 : i32
    %13 = tpu.dynamic_rotate %9 by %c31_i32 dim 0 : vector<32x128xf32>, i32 -> vector<32x128xf32>
    %cst_6 = arith.constant 0.000000e+00 : f32
    %14 = vector.broadcast %cst_6 : f32 to vector<32x128xf32>
    %15 = arith.select %8, %14, %13 : vector<32x128xi1>, vector<32x128xf32>
    %16 = tpu.concatenate %12, %9, %15 in 1 : vector<32x128xf32>, vector<32x128xf32>, vector<32x128xf32> -> vector<32x384xf32>
    %c0_7 = arith.constant 0 : index
    %c0_8 = arith.constant 0 : index
    %17 = vector.load %arg2[%c0_7, %c0_8] : memref<384x128xf32, #tpu.memory_space<vmem>>, vector<384x128xf32>
    %cst_9 = arith.constant dense<0.000000e+00> : vector<32x128xf32>
    %18 = tpu.matmul %16, %17, %cst_9 {dimension_numbers = #tpu.dot_dimension_numbers<[1], [0], [0], [1], [0, 0, 1, 1], [], []>} : vector<32x384xf32>, vector<384x128xf32>, vector<32x128xf32> -> vector<32x128xf32>
    %19 = vector.shape_cast %18 : vector<32x128xf32> to vector<2x16x128xf32>
    %c0_10 = arith.constant 0 : index
    %c0_11 = arith.constant 0 : index
    %20 = vector.load %arg4[%c0_10, %c0_11] : memref<1x8xf32, #tpu.memory_space<vmem>>, vector<1x8xf32>
    %c0_12 = arith.constant 0 : index
    %c0_13 = arith.constant 0 : index
    %21 = vector.load %arg5[%c0_12, %c0_13] : memref<1x8xf32, #tpu.memory_space<vmem>>, vector<1x8xf32>
    %22 = arith.mulf %19, %19 : vector<2x16x128xf32>
    %23 = tpu.concatenate %19, %22 in 2 : vector<2x16x128xf32>, vector<2x16x128xf32> -> vector<2x16x256xf32>
    %cst_14 = arith.constant dense<0.000000e+00> : vector<2x256xf32>
    %24 = vector.multi_reduction <add>, %23, %cst_14 [1] : vector<2x16x256xf32> to vector<2x256xf32>
    %cst_15 = arith.constant dense<0.000000e+00> : vector<2x16xf32>
    %25 = tpu.matmul %24, %1, %cst_15 {dimension_numbers = #tpu.dot_dimension_numbers<[1], [0], [0], [1], [0, 0, 1, 1], [], []>} : vector<2x256xf32>, vector<256x16xf32>, vector<2x16xf32> -> vector<2x16xf32>
    %cst_16 = arith.constant 3.906250e-03 : f32
    %26 = vector.broadcast %cst_16 : f32 to vector<2x16xf32>
    %27 = arith.mulf %25, %26 : vector<2x16xf32>
    %28 = vector.extract_strided_slice %27 {offsets = [0, 0], sizes = [2, 8], strides = [1, 1]} : vector<2x16xf32> to vector<2x8xf32>
    %29 = vector.extract_strided_slice %27 {offsets = [0, 8], sizes = [2, 8], strides = [1, 1]} : vector<2x16xf32> to vector<2x8xf32>
    %30 = arith.mulf %28, %28 : vector<2x8xf32>
    %31 = arith.subf %29, %30 : vector<2x8xf32>
    %cst_17 = arith.constant 9.99999974E-6 : f32
    %32 = vector.broadcast %cst_17 : f32 to vector<2x8xf32>
    %33 = arith.addf %31, %32 : vector<2x8xf32>
    %34 = math.rsqrt %33 : vector<2x8xf32>
    %35 = vector.broadcast %20 : vector<1x8xf32> to vector<2x8xf32>
    %36 = arith.mulf %35, %34 : vector<2x8xf32>
    %37 = arith.mulf %28, %36 : vector<2x8xf32>
    %38 = vector.broadcast %21 : vector<1x8xf32> to vector<2x8xf32>
    %39 = arith.subf %38, %37 : vector<2x8xf32>
    %40 = tpu.concatenate %36, %39 in 1 : vector<2x8xf32>, vector<2x8xf32> -> vector<2x16xf32>
    %cst_18 = arith.constant dense<0.000000e+00> : vector<2x256xf32>
    %41 = tpu.matmul %40, %2, %cst_18 {dimension_numbers = #tpu.dot_dimension_numbers<[1], [0], [0], [1], [0, 0, 1, 1], [], []>} : vector<2x16xf32>, vector<16x256xf32>, vector<2x256xf32> -> vector<2x256xf32>
    %42 = vector.extract_strided_slice %41 {offsets = [0, 0], sizes = [2, 128], strides = [1, 1]} : vector<2x256xf32> to vector<2x128xf32>
    %43 = vector.shape_cast %42 : vector<2x128xf32> to vector<2x1x128xf32>
    %44 = vector.extract_strided_slice %41 {offsets = [0, 128], sizes = [2, 128], strides = [1, 1]} : vector<2x256xf32> to vector<2x128xf32>
    %45 = vector.shape_cast %44 : vector<2x128xf32> to vector<2x1x128xf32>
    %46 = vector.broadcast %43 : vector<2x1x128xf32> to vector<2x16x128xf32>
    %47 = arith.mulf %19, %46 : vector<2x16x128xf32>
    %48 = vector.broadcast %45 : vector<2x1x128xf32> to vector<2x16x128xf32>
    %49 = arith.addf %47, %48 : vector<2x16x128xf32>
    %cst_19 = arith.constant 0.000000e+00 : f32
    %50 = vector.broadcast %cst_19 : f32 to vector<2x16x128xf32>
    %51 = arith.maximumf %49, %50 : vector<2x16x128xf32>
    %52 = vector.shape_cast %51 : vector<2x16x128xf32> to vector<32x128xf32>
    %c1_i32_20 = arith.constant 1 : i32
    %53 = tpu.dynamic_rotate %52 by %c1_i32_20 dim 0 : vector<32x128xf32>, i32 -> vector<32x128xf32>
    %cst_21 = arith.constant 0.000000e+00 : f32
    %54 = vector.broadcast %cst_21 : f32 to vector<32x128xf32>
    %55 = arith.select %6, %54, %53 : vector<32x128xi1>, vector<32x128xf32>
    %c31_i32_22 = arith.constant 31 : i32
    %56 = tpu.dynamic_rotate %52 by %c31_i32_22 dim 0 : vector<32x128xf32>, i32 -> vector<32x128xf32>
    %cst_23 = arith.constant 0.000000e+00 : f32
    %57 = vector.broadcast %cst_23 : f32 to vector<32x128xf32>
    %58 = arith.select %8, %57, %56 : vector<32x128xi1>, vector<32x128xf32>
    %59 = tpu.concatenate %55, %52, %58 in 1 : vector<32x128xf32>, vector<32x128xf32>, vector<32x128xf32> -> vector<32x384xf32>
    %c0_24 = arith.constant 0 : index
    %c0_25 = arith.constant 0 : index
    %60 = vector.load %arg3[%c0_24, %c0_25] : memref<384x128xf32, #tpu.memory_space<vmem>>, vector<384x128xf32>
    %cst_26 = arith.constant dense<0.000000e+00> : vector<32x128xf32>
    %61 = tpu.matmul %59, %60, %cst_26 {dimension_numbers = #tpu.dot_dimension_numbers<[1], [0], [0], [1], [0, 0, 1, 1], [], []>} : vector<32x384xf32>, vector<384x128xf32>, vector<32x128xf32> -> vector<32x128xf32>
    %62 = vector.shape_cast %61 : vector<32x128xf32> to vector<2x16x128xf32>
    %c0_27 = arith.constant 0 : index
    %c0_28 = arith.constant 0 : index
    %63 = vector.load %arg6[%c0_27, %c0_28] : memref<1x8xf32, #tpu.memory_space<vmem>>, vector<1x8xf32>
    %c0_29 = arith.constant 0 : index
    %c0_30 = arith.constant 0 : index
    %64 = vector.load %arg7[%c0_29, %c0_30] : memref<1x8xf32, #tpu.memory_space<vmem>>, vector<1x8xf32>
    %65 = arith.mulf %62, %62 : vector<2x16x128xf32>
    %66 = tpu.concatenate %62, %65 in 2 : vector<2x16x128xf32>, vector<2x16x128xf32> -> vector<2x16x256xf32>
    %cst_31 = arith.constant dense<0.000000e+00> : vector<2x256xf32>
    %67 = vector.multi_reduction <add>, %66, %cst_31 [1] : vector<2x16x256xf32> to vector<2x256xf32>
    %cst_32 = arith.constant dense<0.000000e+00> : vector<2x16xf32>
    %68 = tpu.matmul %67, %1, %cst_32 {dimension_numbers = #tpu.dot_dimension_numbers<[1], [0], [0], [1], [0, 0, 1, 1], [], []>} : vector<2x256xf32>, vector<256x16xf32>, vector<2x16xf32> -> vector<2x16xf32>
    %cst_33 = arith.constant 3.906250e-03 : f32
    %69 = vector.broadcast %cst_33 : f32 to vector<2x16xf32>
    %70 = arith.mulf %68, %69 : vector<2x16xf32>
    %71 = vector.extract_strided_slice %70 {offsets = [0, 0], sizes = [2, 8], strides = [1, 1]} : vector<2x16xf32> to vector<2x8xf32>
    %72 = vector.extract_strided_slice %70 {offsets = [0, 8], sizes = [2, 8], strides = [1, 1]} : vector<2x16xf32> to vector<2x8xf32>
    %73 = arith.mulf %71, %71 : vector<2x8xf32>
    %74 = arith.subf %72, %73 : vector<2x8xf32>
    %cst_34 = arith.constant 9.99999974E-6 : f32
    %75 = vector.broadcast %cst_34 : f32 to vector<2x8xf32>
    %76 = arith.addf %74, %75 : vector<2x8xf32>
    %77 = math.rsqrt %76 : vector<2x8xf32>
    %78 = vector.broadcast %63 : vector<1x8xf32> to vector<2x8xf32>
    %79 = arith.mulf %78, %77 : vector<2x8xf32>
    %80 = arith.mulf %71, %79 : vector<2x8xf32>
    %81 = vector.broadcast %64 : vector<1x8xf32> to vector<2x8xf32>
    %82 = arith.subf %81, %80 : vector<2x8xf32>
    %83 = tpu.concatenate %79, %82 in 1 : vector<2x8xf32>, vector<2x8xf32> -> vector<2x16xf32>
    %cst_35 = arith.constant dense<0.000000e+00> : vector<2x256xf32>
    %84 = tpu.matmul %83, %2, %cst_35 {dimension_numbers = #tpu.dot_dimension_numbers<[1], [0], [0], [1], [0, 0, 1, 1], [], []>} : vector<2x16xf32>, vector<16x256xf32>, vector<2x256xf32> -> vector<2x256xf32>
    %85 = vector.extract_strided_slice %84 {offsets = [0, 0], sizes = [2, 128], strides = [1, 1]} : vector<2x256xf32> to vector<2x128xf32>
    %86 = vector.shape_cast %85 : vector<2x128xf32> to vector<2x1x128xf32>
    %87 = vector.extract_strided_slice %84 {offsets = [0, 128], sizes = [2, 128], strides = [1, 1]} : vector<2x256xf32> to vector<2x128xf32>
    %88 = vector.shape_cast %87 : vector<2x128xf32> to vector<2x1x128xf32>
    %89 = vector.broadcast %86 : vector<2x1x128xf32> to vector<2x16x128xf32>
    %90 = arith.mulf %62, %89 : vector<2x16x128xf32>
    %91 = vector.broadcast %88 : vector<2x1x128xf32> to vector<2x16x128xf32>
    %92 = arith.addf %90, %91 : vector<2x16x128xf32>
    %93 = arith.addf %0, %92 : vector<2x16x128xf32>
    %c0_36 = arith.constant 0 : index
    %c0_37 = arith.constant 0 : index
    %c0_38 = arith.constant 0 : index
    %94 = vector.load %arg10[%c0_36, %c0_37, %c0_38] : memref<2x16x128xf32, #tpu.memory_space<vmem>>, vector<2x16x128xf32>
    tpu.vector_store %arg10[%c0_36, %c0_37, %c0_38], %93 {strides = array<i32>} : memref<2x16x128xf32, #tpu.memory_space<vmem>>, vector<2x16x128xf32>,
    return
  }
  func.func @transform_0(%arg0: i32) -> (i32, i32, i32) {
    %c0_i32 = arith.constant 0 : i32
    %c0_i32_0 = arith.constant 0 : i32
    %c0_i32_1 = arith.constant 0 : i32
    %c0_i32_2 = arith.constant 0 : i32
    return %c0_i32, %c0_i32_0, %c0_i32_1 : i32, i32, i32
  }
  func.func @transform_1(%arg0: i32) -> (i32, i32) {
    %c0_i32 = arith.constant 0 : i32
    %c0_i32_0 = arith.constant 0 : i32
    %c0_i32_1 = arith.constant 0 : i32
    return %c0_i32, %c0_i32_0 : i32, i32
  }
  func.func @transform_2(%arg0: i32) -> (i32, i32) {
    %c0_i32 = arith.constant 0 : i32
    %c0_i32_0 = arith.constant 0 : i32
    %c0_i32_1 = arith.constant 0 : i32
    return %c0_i32, %c0_i32_0 : i32, i32
  }
  func.func @transform_3(%arg0: i32) -> (i32, i32) {
    %c0_i32 = arith.constant 0 : i32
    %c0_i32_0 = arith.constant 0 : i32
    %c0_i32_1 = arith.constant 0 : i32
    return %c0_i32, %c0_i32_0 : i32, i32
  }
  func.func @transform_4(%arg0: i32) -> (i32, i32) {
    %c0_i32 = arith.constant 0 : i32
    %c0_i32_0 = arith.constant 0 : i32
    %c0_i32_1 = arith.constant 0 : i32
    return %c0_i32, %c0_i32_0 : i32, i32
  }
  func.func @transform_5(%arg0: i32) -> (i32, i32) {
    %c0_i32 = arith.constant 0 : i32
    %c0_i32_0 = arith.constant 0 : i32
    %c0_i32_1 = arith.constant 0 : i32
    return %c0_i32, %c0_i32_0 : i32, i32
  }
  func.func @transform_6(%arg0: i32) -> (i32, i32) {
    %c0_i32 = arith.constant 0 : i32
    %c0_i32_0 = arith.constant 0 : i32
    %c0_i32_1 = arith.constant 0 : i32
    return %c0_i32, %c0_i32_0 : i32, i32
  }
  func.func @transform_7(%arg0: i32) -> (i32, i32) {
    %c0_i32 = arith.constant 0 : i32
    %c0_i32_0 = arith.constant 0 : i32
    %c0_i32_1 = arith.constant 0 : i32
    return %c0_i32, %c0_i32_0 : i32, i32
  }
  func.func @transform_8(%arg0: i32) -> (i32, i32) {
    %c0_i32 = arith.constant 0 : i32
    %c0_i32_0 = arith.constant 0 : i32
    %c0_i32_1 = arith.constant 0 : i32
    return %c0_i32, %c0_i32_0 : i32, i32
  }
  func.func @transform_9(%arg0: i32) -> (i32, i32, i32) {
    %c0_i32 = arith.constant 0 : i32
    %c0_i32_0 = arith.constant 0 : i32
    %c0_i32_1 = arith.constant 0 : i32
    %c0_i32_2 = arith.constant 0 : i32
    return %c0_i32, %c0_i32_0, %c0_i32_1 : i32, i32, i32
  }
}

</mosaic_0001>

<llo_original>
// kernel: residual_block_forward.1
$region0: #{residual_block_forward.1}
  #allocation0 [shape = 'u32[]', space=smem, size = 0x4, offset = 0x4, fixed_abs, tag = 'smem constant byte address 0x4 - core index']
  #allocation1 [shape = 'u32[72,128]{1,0:T(1,128)}', space=vmem, size = 0x9000, scoped, tag = 'internal scratch']
  %s0 = inlined_call_operand.vmem [shape: f32[2,16,128], index: 0, kind: input, shape index: {}]
  %s1 = inlined_call_operand.vmem [shape: f32[384,128], index: 1, kind: input, shape index: {}]
  %s2 = inlined_call_operand.vmem [shape: f32[384,128], index: 2, kind: input, shape index: {}]
  %s3 = inlined_call_operand.vmem [shape: f32[1,8], index: 3, kind: input, shape index: {}]
  %s4 = inlined_call_operand.vmem [shape: f32[1,8], index: 4, kind: input, shape index: {}]
  %s5 = inlined_call_operand.vmem [shape: f32[1,8], index: 5, kind: input, shape index: {}]
  %s6 = inlined_call_operand.vmem [shape: f32[1,8], index: 6, kind: input, shape index: {}]
  %s7 = inlined_call_operand.vmem [shape: f32[256,16], index: 7, kind: input, shape index: {}]
  %s8 = inlined_call_operand.vmem [shape: f32[16,256], index: 8, kind: input, shape index: {}]
  %s9 = inlined_call_operand.vmem [shape: f32[2,16,128], index: 9, kind: output, shape index: {}]
  %s10 = sld [smem:[#allocation0]]
  $region46: #{residual_block_forward.1} parent=0
    _
  %s12 = ssub.s32 1, %s10
  %s13 = scalar_select 0, %s12, %s10
  // Predicated region
  $region2: #{residual_block_forward.1} parent=0 // pred_check
    _
  $region3: #{residual_block_forward.1} parent=0 // pred_check_branch
    %15 = sbr.rel (0) target = $region5
  $region4: #{residual_block_forward.1} parent=0 // pred_region
    _
  $region5: #{residual_block_forward.1} parent=0 // pred_fallthru
    _
  // Predicated region
  $region6: #{residual_block_forward.1} parent=0 // pred_check
    _
  $region7: #{residual_block_forward.1} parent=0 // pred_check_branch
    %17 = sbr.rel (0) target = $region9
  $region8: #{residual_block_forward.1} parent=0 // pred_region
    _
  $region9: #{residual_block_forward.1} parent=0 // pred_fallthru
    _
  // Predicated region
  $region10: #{residual_block_forward.1} parent=0 // pred_check
    _
  $region11: #{residual_block_forward.1} parent=0 // pred_check_branch
    %19 = sbr.rel (0) target = $region13
  $region12: #{residual_block_forward.1} parent=0 // pred_region
    _
  $region13: #{residual_block_forward.1} parent=0 // pred_fallthru
    _
  // Predicated region
  $region14: #{residual_block_forward.1} parent=0 // pred_check
    _
  $region15: #{residual_block_forward.1} parent=0 // pred_check_branch
    %21 = sbr.rel (0) target = $region17
  $region16: #{residual_block_forward.1} parent=0 // pred_region
    _
  $region17: #{residual_block_forward.1} parent=0 // pred_fallthru
    _
  // Predicated region
  $region18: #{residual_block_forward.1} parent=0 // pred_check
    _
  $region19: #{residual_block_forward.1} parent=0 // pred_check_branch
    %23 = sbr.rel (0) target = $region21
  $region20: #{residual_block_forward.1} parent=0 // pred_region
    _
  $region21: #{residual_block_forward.1} parent=0 // pred_fallthru
    _
  // Predicated region
  $region22: #{residual_block_forward.1} parent=0 // pred_check
    _
  $region23: #{residual_block_forward.1} parent=0 // pred_check_branch
    %25 = sbr.rel (0) target = $region25
  $region24: #{residual_block_forward.1} parent=0 // pred_region
    _
  $region25: #{residual_block_forward.1} parent=0 // pred_fallthru
    _
  // Predicated region
  $region26: #{residual_block_forward.1} parent=0 // pred_check
    _
  $region27: #{residual_block_forward.1} parent=0 // pred_check_branch
    %27 = sbr.rel (0) target = $region29
  $region28: #{residual_block_forward.1} parent=0 // pred_region
    _
  $region29: #{residual_block_forward.1} parent=0 // pred_fallthru
    _
  // Predicated region
  $region30: #{residual_block_forward.1} parent=0 // pred_check
    _
  $region31: #{residual_block_forward.1} parent=0 // pred_check_branch
    %29 = sbr.rel (0) target = $region33
  $region32: #{residual_block_forward.1} parent=0 // pred_region
    _
  $region33: #{residual_block_forward.1} parent=0 // pred_fallthru
    _
  // Predicated region
  $region34: #{residual_block_forward.1} parent=0 // pred_check
    _
  $region35: #{residual_block_forward.1} parent=0 // pred_check_branch
    %31 = sbr.rel (0) target = $region37
  $region36: #{residual_block_forward.1} parent=0 // pred_region
    _
  $region37: #{residual_block_forward.1} parent=0 // pred_fallthru
    _
  %v32 = vld [vmem:[%s0] sm:$0xff]
  %v33 = vld [vmem:[%s0 + $0x8] sm:$0xff]
  %v34 = vld [vmem:[%s0 + $0x10] sm:$0xff]
  %v35 = vld [vmem:[%s0 + $0x18] sm:$0xff]
  %v36 = vld [vmem:[%s7] sm:$0xff]
  %v37 = vld [vmem:[%s7 + $0x8] sm:$0xff]
  %v38 = vld [vmem:[%s7 + $0x10] sm:$0xff]
  %v39 = vld [vmem:[%s7 + $0x18] sm:$0xff]
  %v40 = vld [vmem:[%s7 + $0x20] sm:$0xff]
  %v41 = vld [vmem:[%s7 + $0x28] sm:$0xff]
  %v42 = vld [vmem:[%s7 + $0x30] sm:$0xff]
  %v43 = vld [vmem:[%s7 + $0x38] sm:$0xff]
  %v44 = vld [vmem:[%s7 + $0x40] sm:$0xff]
  %v45 = vld [vmem:[%s7 + $0x48] sm:$0xff]
  %v46 = vld [vmem:[%s7 + $0x50] sm:$0xff]
  %v47 = vld [vmem:[%s7 + $0x58] sm:$0xff]
  %v48 = vld [vmem:[%s7 + $0x60] sm:$0xff]
  %v49 = vld [vmem:[%s7 + $0x68] sm:$0xff]
  %v50 = vld [vmem:[%s7 + $0x70] sm:$0xff]
  %v51 = vld [vmem:[%s7 + $0x78] sm:$0xff]
  %v52 = vld [vmem:[%s7 + $0x80] sm:$0xff]
  %v53 = vld [vmem:[%s7 + $0x88] sm:$0xff]
  %v54 = vld [vmem:[%s7 + $0x90] sm:$0xff]
  %v55 = vld [vmem:[%s7 + $0x98] sm:$0xff]
  %v56 = vld [vmem:[%s7 + $0xa0] sm:$0xff]
  %v57 = vld [vmem:[%s7 + $0xa8] sm:$0xff]
  %v58 = vld [vmem:[%s7 + $0xb0] sm:$0xff]
  %v59 = vld [vmem:[%s7 + $0xb8] sm:$0xff]
  %v60 = vld [vmem:[%s7 + $0xc0] sm:$0xff]
  %v61 = vld [vmem:[%s7 + $0xc8] sm:$0xff]
  %v62 = vld [vmem:[%s7 + $0xd0] sm:$0xff]
  %v63 = vld [vmem:[%s7 + $0xd8] sm:$0xff]
  %v64 = vld [vmem:[%s7 + $0xe0] sm:$0xff]
  %v65 = vld [vmem:[%s7 + $0xe8] sm:$0xff]
  %v66 = vld [vmem:[%s7 + $0xf0] sm:$0xff]
  %v67 = vld [vmem:[%s7 + $0xf8] sm:$0xff]
  %v68 = vld [vmem:[%s8] sm:$0xff]
  %v69 = vld [vmem:[%s8 + $0x8] sm:$0xff]
  %v70 = vld [vmem:[%s8 + $0x10] sm:$0xff]
  %v71 = vld [vmem:[%s8 + $0x18] sm:$0xff]
  %v72 = vlaneseq
  %v73 = vshrl.u32 %v72, 7
  %v74 = vadd.s32 %v73, 8
  %vm75 = vcmp.eq.s32.totalorder %v73, 0
  %vm76 = vcmp.eq.s32.totalorder %v74, 0
  %vm77 = vcmp.eq.s32.totalorder %v73, 15
  %vm78 = vcmp.eq.s32.totalorder %v74, 15
  %v79 = vrot.slane %v32, 7
  %v80 = vrot.slane %v33, 7
  %v81 = vrot.slane %v34, 7
  %v82 = vrot.slane %v35, 7
  %vm83 = vcmp.lt.s32.totalorder %v73, 1
  %v84 = vsel %vm83, %v81, %v82
  %v85 = vsel %vm83, %v80, %v81
  %v86 = vsel %vm83, %v79, %v80
  %v87 = vsel %vm83, %v82, %v79
  %v88 = vsel %vm75, 0.0, %v87
  %v89 = vsel %vm76, 0.0, %v86
  %v90 = vsel %vm75, 0.0, %v85
  %v91 = vsel %vm76, 0.0, %v84
  %v92 = vrot.slane %v32, 1
  %v93 = vrot.slane %v33, 1
  %v94 = vrot.slane %v34, 1
  %v95 = vrot.slane %v35, 1
  %vm96 = vcmp.lt.s32.totalorder %v73, 7
  %v97 = vsel %vm96, %v94, %v95
  %v98 = vsel %vm96, %v93, %v94
  %v99 = vsel %vm96, %v92, %v93
  %v100 = vsel %vm96, %v95, %v92
  %v101 = vsel %vm77, 0.0, %v99
  %v102 = vsel %vm78, 0.0, %v98
  %v103 = vsel %vm77, 0.0, %v97
  %v104 = vsel %vm78, 0.0, %v100
  %v105 = vld [vmem:[%s1] sm:$0xff]
  %v106 = vld [vmem:[%s1 + $0x8] sm:$0xff]
  %v107 = vld [vmem:[%s1 + $0x10] sm:$0xff]
  %v108 = vld [vmem:[%s1 + $0x18] sm:$0xff]
  %v109 = vld [vmem:[%s1 + $0x20] sm:$0xff]
  %v110 = vld [vmem:[%s1 + $0x28] sm:$0xff]
  %v111 = vld [vmem:[%s1 + $0x30] sm:$0xff]
  %v112 = vld [vmem:[%s1 + $0x38] sm:$0xff]
  %v113 = vld [vmem:[%s1 + $0x40] sm:$0xff]
  %v114 = vld [vmem:[%s1 + $0x48] sm:$0xff]
  %v115 = vld [vmem:[%s1 + $0x50] sm:$0xff]
  %v116 = vld [vmem:[%s1 + $0x58] sm:$0xff]
  %v117 = vld [vmem:[%s1 + $0x60] sm:$0xff]
  %v118 = vld [vmem:[%s1 + $0x68] sm:$0xff]
  %v119 = vld [vmem:[%s1 + $0x70] sm:$0xff]
  %v120 = vld [vmem:[%s1 + $0x78] sm:$0xff]
  %v121 = vld [vmem:[%s1 + $0x80] sm:$0xff]
  %v122 = vld [vmem:[%s1 + $0x88] sm:$0xff]
  %v123 = vld [vmem:[%s1 + $0x90] sm:$0xff]
  %v124 = vld [vmem:[%s1 + $0x98] sm:$0xff]
  %v125 = vld [vmem:[%s1 + $0xa0] sm:$0xff]
  %v126 = vld [vmem:[%s1 + $0xa8] sm:$0xff]
  %v127 = vld [vmem:[%s1 + $0xb0] sm:$0xff]
  %v128 = vld [vmem:[%s1 + $0xb8] sm:$0xff]
  %v129 = vld [vmem:[%s1 + $0xc0] sm:$0xff]
  %v130 = vld [vmem:[%s1 + $0xc8] sm:$0xff]
  %v131 = vld [vmem:[%s1 + $0xd0] sm:$0xff]
  %v132 = vld [vmem:[%s1 + $0xd8] sm:$0xff]
  %v133 = vld [vmem:[%s1 + $0xe0] sm:$0xff]
  %v134 = vld [vmem:[%s1 + $0xe8] sm:$0xff]
  %v135 = vld [vmem:[%s1 + $0xf0] sm:$0xff]
  %v136 = vld [vmem:[%s1 + $0xf8] sm:$0xff]
  %v137 = vld [vmem:[%s1 + $0x100] sm:$0xff]
  %v138 = vld [vmem:[%s1 + $0x108] sm:$0xff]
  %v139 = vld [vmem:[%s1 + $0x110] sm:$0xff]
  %v140 = vld [vmem:[%s1 + $0x118] sm:$0xff]
  %v141 = vld [vmem:[%s1 + $0x120] sm:$0xff]
  %v142 = vld [vmem:[%s1 + $0x128] sm:$0xff]
  %v143 = vld [vmem:[%s1 + $0x130] sm:$0xff]
  %v144 = vld [vmem:[%s1 + $0x138] sm:$0xff]
  %v145 = vld [vmem:[%s1 + $0x140] sm:$0xff]
  %v146 = vld [vmem:[%s1 + $0x148] sm:$0xff]
  %v147 = vld [vmem:[%s1 + $0x150] sm:$0xff]
  %v148 = vld [vmem:[%s1 + $0x158] sm:$0xff]
  %v149 = vld [vmem:[%s1 + $0x160] sm:$0xff]
  %v150 = vld [vmem:[%s1 + $0x168] sm:$0xff]
  %v151 = vld [vmem:[%s1 + $0x170] sm:$0xff]
  %v152 = vld [vmem:[%s1 + $0x178] sm:$0xff]
  %153 = vmatpush.msra.mxu0 %v120
  %154 = vmatpush.msra.mxu0 %v119
  %155 = vmatpush.msra.mxu0 %v118
  %156 = vmatpush.msra.mxu0 %v117
  %157 = vmatpush.msra.mxu0 %v116
  %158 = vmatpush.msra.mxu0 %v115
  %159 = vmatpush.msra.mxu0 %v114
  %160 = vmatpush.msra.mxu0 %v113
  %161 = vmatpush.msra.mxu0 %v112
  %162 = vmatpush.msra.mxu0 %v111
  %163 = vmatpush.msra.mxu0 %v110
  %164 = vmatpush.msra.mxu0 %v109
  %165 = vmatpush.msra.mxu0 %v108
  %166 = vmatpush.msra.mxu0 %v107
  %167 = vmatpush.msra.mxu0 %v106
  %168 = vmatpush.msra.mxu0 %v105
  %169 = vmatmul.f32.gmra.mxu0 %v88
  %v170 = vpop.f32.mrf.mxu0
  %v171 = vadd.f32 0.0, %v170
  %172 = vmatmul.f32.gmra.mxu0 %v89
  %v173 = vpop.f32.mrf.mxu0
  %v174 = vadd.f32 0.0, %v173
  %175 = vmatmul.f32.gmra.mxu0 %v90
  %v176 = vpop.f32.mrf.mxu0
  %v177 = vadd.f32 0.0, %v176
  %178 = vmatmul.f32.gmra.mxu0 %v91
  %v179 = vpop.f32.mrf.mxu0
  %v180 = vadd.f32 0.0, %v179
  %181 = vdwg.mxu0
  %182 = vmatpush.msra.mxu0 %v136
  %183 = vmatpush.msra.mxu0 %v135
  %184 = vmatpush.msra.mxu0 %v134
  %185 = vmatpush.msra.mxu0 %v133
  %186 = vmatpush.msra.mxu0 %v132
  %187 = vmatpush.msra.mxu0 %v131
  %188 = vmatpush.msra.mxu0 %v130
  %189 = vmatpush.msra.mxu0 %v129
  %190 = vmatpush.msra.mxu0 %v128
  %191 = vmatpush.msra.mxu0 %v127
  %192 = vmatpush.msra.mxu0 %v126
  %193 = vmatpush.msra.mxu0 %v125
  %194 = vmatpush.msra.mxu0 %v124
  %195 = vmatpush.msra.mxu0 %v123
  %196 = vmatpush.msra.mxu0 %v122
  %197 = vmatpush.msra.mxu0 %v121
  %198 = vmatmul.f32.gmra.mxu0 %v32
  %v199 = vpop.f32.mrf.mxu0
  %v200 = vadd.f32 %v171, %v199
  %201 = vmatmul.f32.gmra.mxu0 %v33
  %v202 = vpop.f32.mrf.mxu0
  %v203 = vadd.f32 %v174, %v202
  %204 = vmatmul.f32.gmra.mxu0 %v34
  %v205 = vpop.f32.mrf.mxu0
  %v206 = vadd.f32 %v177, %v205
  %207 = vmatmul.f32.gmra.mxu0 %v35
  %v208 = vpop.f32.mrf.mxu0
  %v209 = vadd.f32 %v180, %v208
  %210 = vdwg.mxu0
  %211 = vmatpush.msra.mxu0 %v152
  %212 = vmatpush.msra.mxu0 %v151
  %213 = vmatpush.msra.mxu0 %v150
  %214 = vmatpush.msra.mxu0 %v149
  %215 = vmatpush.msra.mxu0 %v148
  %216 = vmatpush.msra.mxu0 %v147
  %217 = vmatpush.msra.mxu0 %v146
  %218 = vmatpush.msra.mxu0 %v145
  %219 = vmatpush.msra.mxu0 %v144
  %220 = vmatpush.msra.mxu0 %v143
  %221 = vmatpush.msra.mxu0 %v142
  %222 = vmatpush.msra.mxu0 %v141
  %223 = vmatpush.msra.mxu0 %v140
  %224 = vmatpush.msra.mxu0 %v139
  %225 = vmatpush.msra.mxu0 %v138
  %226 = vmatpush.msra.mxu0 %v137
  %227 = vmatmul.f32.gmra.mxu0 %v101
  %v228 = vpop.f32.mrf.mxu0
  %v229 = vadd.f32 %v200, %v228
  %230 = vmatmul.f32.gmra.mxu0 %v102
  %v231 = vpop.f32.mrf.mxu0
  %v232 = vadd.f32 %v203, %v231
  %233 = vmatmul.f32.gmra.mxu0 %v103
  %v234 = vpop.f32.mrf.mxu0
  %v235 = vadd.f32 %v206, %v234
  %236 = vmatmul.f32.gmra.mxu0 %v104
  %v237 = vpop.f32.mrf.mxu0
  %v238 = vadd.f32 %v209, %v237
  %239 = vdwg.mxu0
  %v240 = vld [vmem:[%s3] sm:$0x1]
  %v241 = vld [vmem:[%s4] sm:$0x1]
  %v242 = vmul.f32 %v229, %v229
  %v243 = vmul.f32 %v232, %v232
  %v244 = vmul.f32 %v235, %v235
  %v245 = vmul.f32 %v238, %v238
  %v246 = vadd.f32 %v229, %v232
  %v247 = vrot.slane %v246, 4
  %v248 = vadd.f32 %v246, %v247
  %v249 = vrot.slane %v248, 2
  %v250 = vadd.f32 %v248, %v249
  %v251 = vrot.slane %v250, 1
  %v252 = vadd.f32 %v250, %v251
  %v253 = vadd.f32 %v242, %v243
  %v254 = vrot.slane %v253, 4
  %v255 = vadd.f32 %v253, %v254
  %v256 = vrot.slane %v255, 2
  %v257 = vadd.f32 %v255, %v256
  %v258 = vrot.slane %v257, 1
  %v259 = vadd.f32 %v257, %v258
  %v260 = vadd.f32 %v235, %v238
  %v261 = vrot.slane %v260, 4
  %v262 = vadd.f32 %v260, %v261
  %v263 = vrot.slane %v262, 2
  %v264 = vadd.f32 %v262, %v263
  %v265 = vrot.slane %v264, 1
  %v266 = vadd.f32 %v264, %v265
  %v267 = vadd.f32 %v244, %v245
  %v268 = vrot.slane %v267, 4
  %v269 = vadd.f32 %v267, %v268
  %v270 = vrot.slane %v269, 2
  %v271 = vadd.f32 %v269, %v270
  %v272 = vrot.slane %v271, 1
  %v273 = vadd.f32 %v271, %v272
  %vm278 = vcmask 1041409
  %v279 = vsel %vm278, %v266, %v252
  %v280 = vsel %vm278, %v273, %v259
  %283 = vmatpush.msra.mxu0 %v51
  %284 = vmatpush.msra.mxu0 %v50
  %285 = vmatpush.msra.mxu0 %v49
  %286 = vmatpush.msra.mxu0 %v48
  %287 = vmatpush.msra.mxu0 %v47
  %288 = vmatpush.msra.mxu0 %v46
  %289 = vmatpush.msra.mxu0 %v45
  %290 = vmatpush.msra.mxu0 %v44
  %291 = vmatpush.msra.mxu0 %v43
  %292 = vmatpush.msra.mxu0 %v42
  %293 = vmatpush.msra.mxu0 %v41
  %294 = vmatpush.msra.mxu0 %v40
  %295 = vmatpush.msra.mxu0 %v39
  %296 = vmatpush.msra.mxu0 %v38
  %297 = vmatpush.msra.mxu0 %v37
  %298 = vmatpush.msra.mxu0 %v36
  %299 = vmatmul.f32.gmra.mxu0 %v279
  %v300 = vpop.f32.mrf.mxu0
  %v301 = vadd.f32 0.0, %v300
  %302 = vdwg.mxu0
  %303 = vmatpush.msra.mxu0 %v67
  %304 = vmatpush.msra.mxu0 %v66
  %305 = vmatpush.msra.mxu0 %v65
  %306 = vmatpush.msra.mxu0 %v64
  %307 = vmatpush.msra.mxu0 %v63
  %308 = vmatpush.msra.mxu0 %v62
  %309 = vmatpush.msra.mxu0 %v61
  %310 = vmatpush.msra.mxu0 %v60
  %311 = vmatpush.msra.mxu0 %v59
  %312 = vmatpush.msra.mxu0 %v58
  %313 = vmatpush.msra.mxu0 %v57
  %314 = vmatpush.msra.mxu0 %v56
  %315 = vmatpush.msra.mxu0 %v55
  %316 = vmatpush.msra.mxu0 %v54
  %317 = vmatpush.msra.mxu0 %v53
  %318 = vmatpush.msra.mxu0 %v52
  %319 = vmatmul.f32.gmra.mxu0 %v280
  %v320 = vpop.f32.mrf.mxu0
  %v321 = vadd.f32 %v301, %v320
  %322 = vdwg.mxu0
  %v323 = vmul.f32 %v321, 0.00390625
  %v324 = vmul.f32 %v323, %v323
  %326 = vrot.lane.b32.xlu0 %v324, 8
  %v327 = vpop.permute.xlu0 %326
  %v329 = vsub.f32 %v323, %v327
  %v330 = vadd.f32 %v329, 1e-05
  %v331 = vrsqrt.pop %v330
  %v332 = vmul.f32 %v331, %v330
  %v333 = vmul.f32 %v332, %v331
  %v334 = vmul.f32 0.5, %v333
  %v335 = vsub.f32 1.5, %v334
  %v336 = vmul.f32 %v331, %v335
  %vm337 = vweird.f32 %v330
  %vm338 = vweird.f32 %v331
  %vm339 = vmor %vm337, %vm338
  %v340 = vsel %vm339, %v331, %v336
  %v342 = vperm.slane %v240, 0
  %345 = vrot.lane.b32.xlu0 %v340, 120
  %v346 = vpop.permute.xlu0 %345
  %v348 = vmul.f32 %v342, %v346
  %v349 = vmul.f32 %v323, %v348
  %v351 = vperm.slane %v241, 0
  %v353 = vsub.f32 %v351, %v349
  %355 = vrot.lane.b32.xlu0 %v353, 8
  %v356 = vpop.permute.xlu0 %355
  %vm358 = vcmask 64512
  %v359 = vsel %vm358, %v348, %v356
  %vm360 = vcmask 130048
  %v362 = vsel %vm360, %v359, 0
  %364 = vmatpush.msra.mxu0 0.0
  %365 = vmatpush.msra.mxu0 0.0
  %366 = vmatpush.msra.mxu0 0.0
  %367 = vmatpush.msra.mxu0 0.0
  %368 = vmatpush.msra.mxu0 0.0
  %369 = vmatpush.msra.mxu0 0.0
  %370 = vmatpush.msra.mxu0 0.0
  %371 = vmatpush.msra.mxu0 0.0
  %372 = vmatpush.msra.mxu0 0.0
  %373 = vmatpush.msra.mxu0 0.0
  %374 = vmatpush.msra.mxu0 0.0
  %375 = vmatpush.msra.mxu0 0.0
  %376 = vmatpush.msra.mxu0 0.0
  %377 = vmatpush.msra.mxu0 0.0
  %378 = vmatpush.msra.mxu0 %v70
  %379 = vmatpush.msra.mxu0 %v68
  %380 = vmatmul.f32.gmra.mxu0 %v362
  %v381 = vpop.f32.mrf.mxu0
  %v382 = vadd.f32 0.0, %v381
  %383 = vdwg.mxu0
  %384 = vmatpush.msra.mxu0 0.0
  %385 = vmatpush.msra.mxu0 0.0
  %386 = vmatpush.msra.mxu0 0.0
  %387 = vmatpush.msra.mxu0 0.0
  %388 = vmatpush.msra.mxu0 0.0
  %389 = vmatpush.msra.mxu0 0.0
  %390 = vmatpush.msra.mxu0 0.0
  %391 = vmatpush.msra.mxu0 0.0
  %392 = vmatpush.msra.mxu0 0.0
  %393 = vmatpush.msra.mxu0 0.0
  %394 = vmatpush.msra.mxu0 0.0
  %395 = vmatpush.msra.mxu0 0.0
  %396 = vmatpush.msra.mxu0 0.0
  %397 = vmatpush.msra.mxu0 0.0
  %398 = vmatpush.msra.mxu0 %v71
  %399 = vmatpush.msra.mxu0 %v69
  %400 = vmatmul.f32.gmra.mxu0 %v362
  %v401 = vpop.f32.mrf.mxu0
  %v402 = vadd.f32 0.0, %v401
  %403 = vdwg.mxu0
  %v405 = vrot.slane %v382, 1
  %v407 = vrot.slane %v402, 1
  %v408 = vperm.slane %v382, 0
  %v409 = vperm.slane %v405, 0
  %v412 = vmul.f32 %v229, %v408
  %v413 = vmul.f32 %v232, %v408
  %v414 = vmul.f32 %v235, %v409
  %v415 = vmul.f32 %v238, %v409
  %v416 = vperm.slane %v402, 0
  %v417 = vperm.slane %v407, 0
  %v420 = vadd.f32 %v412, %v416
  %v421 = vadd.f32 %v413, %v416
  %v422 = vadd.f32 %v414, %v417
  %v423 = vadd.f32 %v415, %v417
  %v424 = vmax.f32 %v420, 0.0
  %v425 = vmax.f32 %v421, 0.0
  %v426 = vmax.f32 %v422, 0.0
  %v427 = vmax.f32 %v423, 0.0
  %v428 = vrot.slane %v424, 7
  %v429 = vrot.slane %v425, 7
  %v430 = vrot.slane %v426, 7
  %v431 = vrot.slane %v427, 7
  %v432 = vsel %vm83, %v430, %v431
  %v433 = vsel %vm83, %v429, %v430
  %v434 = vsel %vm83, %v428, %v429
  %v435 = vsel %vm83, %v431, %v428
  %v436 = vsel %vm75, 0.0, %v435
  %v437 = vsel %vm76, 0.0, %v434
  %v438 = vsel %vm75, 0.0, %v433
  %v439 = vsel %vm76, 0.0, %v432
  %v440 = vrot.slane %v424, 1
  %v441 = vrot.slane %v425, 1
  %v442 = vrot.slane %v426, 1
  %v443 = vrot.slane %v427, 1
  %v444 = vsel %vm96, %v442, %v443
  %v445 = vsel %vm96, %v441, %v442
  %v446 = vsel %vm96, %v440, %v441
  %v447 = vsel %vm96, %v443, %v440
  %v448 = vsel %vm77, 0.0, %v446
  %v449 = vsel %vm78, 0.0, %v445
  %v450 = vsel %vm77, 0.0, %v444
  %v451 = vsel %vm78, 0.0, %v447
  %v452 = vld [vmem:[%s2] sm:$0xff]
  %v453 = vld [vmem:[%s2 + $0x8] sm:$0xff]
  %v454 = vld [vmem:[%s2 + $0x10] sm:$0xff]
  %v455 = vld [vmem:[%s2 + $0x18] sm:$0xff]
  %v456 = vld [vmem:[%s2 + $0x20] sm:$0xff]
  %v457 = vld [vmem:[%s2 + $0x28] sm:$0xff]
  %v458 = vld [vmem:[%s2 + $0x30] sm:$0xff]
  %v459 = vld [vmem:[%s2 + $0x38] sm:$0xff]
  %v460 = vld [vmem:[%s2 + $0x40] sm:$0xff]
  %v461 = vld [vmem:[%s2 + $0x48] sm:$0xff]
  %v462 = vld [vmem:[%s2 + $0x50] sm:$0xff]
  %v463 = vld [vmem:[%s2 + $0x58] sm:$0xff]
  %v464 = vld [vmem:[%s2 + $0x60] sm:$0xff]
  %v465 = vld [vmem:[%s2 + $0x68] sm:$0xff]
  %v466 = vld [vmem:[%s2 + $0x70] sm:$0xff]
  %v467 = vld [vmem:[%s2 + $0x78] sm:$0xff]
  %v468 = vld [vmem:[%s2 + $0x80] sm:$0xff]
  %v469 = vld [vmem:[%s2 + $0x88] sm:$0xff]
  %v470 = vld [vmem:[%s2 + $0x90] sm:$0xff]
  %v471 = vld [vmem:[%s2 + $0x98] sm:$0xff]
  %v472 = vld [vmem:[%s2 + $0xa0] sm:$0xff]
  %v473 = vld [vmem:[%s2 + $0xa8] sm:$0xff]
  %v474 = vld [vmem:[%s2 + $0xb0] sm:$0xff]
  %v475 = vld [vmem:[%s2 + $0xb8] sm:$0xff]
  %v476 = vld [vmem:[%s2 + $0xc0] sm:$0xff]
  %v477 = vld [vmem:[%s2 + $0xc8] sm:$0xff]
  %v478 = vld [vmem:[%s2 + $0xd0] sm:$0xff]
  %v479 = vld [vmem:[%s2 + $0xd8] sm:$0xff]
  %v480 = vld [vmem:[%s2 + $0xe0] sm:$0xff]
  %v481 = vld [vmem:[%s2 + $0xe8] sm:$0xff]
  %v482 = vld [vmem:[%s2 + $0xf0] sm:$0xff]
  %v483 = vld [vmem:[%s2 + $0xf8] sm:$0xff]
  %v484 = vld [vmem:[%s2 + $0x100] sm:$0xff]
  %v485 = vld [vmem:[%s2 + $0x108] sm:$0xff]
  %v486 = vld [vmem:[%s2 + $0x110] sm:$0xff]
  %v487 = vld [vmem:[%s2 + $0x118] sm:$0xff]
  %v488 = vld [vmem:[%s2 + $0x120] sm:$0xff]
  %v489 = vld [vmem:[%s2 + $0x128] sm:$0xff]
  %v490 = vld [vmem:[%s2 + $0x130] sm:$0xff]
  %v491 = vld [vmem:[%s2 + $0x138] sm:$0xff]
  %v492 = vld [vmem:[%s2 + $0x140] sm:$0xff]
  %v493 = vld [vmem:[%s2 + $0x148] sm:$0xff]
  %v494 = vld [vmem:[%s2 + $0x150] sm:$0xff]
  %v495 = vld [vmem:[%s2 + $0x158] sm:$0xff]
  %v496 = vld [vmem:[%s2 + $0x160] sm:$0xff]
  %v497 = vld [vmem:[%s2 + $0x168] sm:$0xff]
  %v498 = vld [vmem:[%s2 + $0x170] sm:$0xff]
  %v499 = vld [vmem:[%s2 + $0x178] sm:$0xff]
  %500 = vmatpush.msra.mxu0 %v467
  %501 = vmatpush.msra.mxu0 %v466
  %502 = vmatpush.msra.mxu0 %v465
  %503 = vmatpush.msra.mxu0 %v464
  %504 = vmatpush.msra.mxu0 %v463
  %505 = vmatpush.msra.mxu0 %v462
  %506 = vmatpush.msra.mxu0 %v461
  %507 = vmatpush.msra.mxu0 %v460
  %508 = vmatpush.msra.mxu0 %v459
  %509 = vmatpush.msra.mxu0 %v458
  %510 = vmatpush.msra.mxu0 %v457
  %511 = vmatpush.msra.mxu0 %v456
  %512 = vmatpush.msra.mxu0 %v455
  %513 = vmatpush.msra.mxu0 %v454
  %514 = vmatpush.msra.mxu0 %v453
  %515 = vmatpush.msra.mxu0 %v452
  %516 = vmatmul.f32.gmra.mxu0 %v436
  %v517 = vpop.f32.mrf.mxu0
  %v518 = vadd.f32 0.0, %v517
  %519 = vmatmul.f32.gmra.mxu0 %v437
  %v520 = vpop.f32.mrf.mxu0
  %v521 = vadd.f32 0.0, %v520
  %522 = vmatmul.f32.gmra.mxu0 %v438
  %v523 = vpop.f32.mrf.mxu0
  %v524 = vadd.f32 0.0, %v523
  %525 = vmatmul.f32.gmra.mxu0 %v439
  %v526 = vpop.f32.mrf.mxu0
  %v527 = vadd.f32 0.0, %v526
  %528 = vdwg.mxu0
  %529 = vmatpush.msra.mxu0 %v483
  %530 = vmatpush.msra.mxu0 %v482
  %531 = vmatpush.msra.mxu0 %v481
  %532 = vmatpush.msra.mxu0 %v480
  %533 = vmatpush.msra.mxu0 %v479
  %534 = vmatpush.msra.mxu0 %v478
  %535 = vmatpush.msra.mxu0 %v477
  %536 = vmatpush.msra.mxu0 %v476
  %537 = vmatpush.msra.mxu0 %v475
  %538 = vmatpush.msra.mxu0 %v474
  %539 = vmatpush.msra.mxu0 %v473
  %540 = vmatpush.msra.mxu0 %v472
  %541 = vmatpush.msra.mxu0 %v471
  %542 = vmatpush.msra.mxu0 %v470
  %543 = vmatpush.msra.mxu0 %v469
  %544 = vmatpush.msra.mxu0 %v468
  %545 = vmatmul.f32.gmra.mxu0 %v424
  %v546 = vpop.f32.mrf.mxu0
  %v547 = vadd.f32 %v518, %v546
  %548 = vmatmul.f32.gmra.mxu0 %v425
  %v549 = vpop.f32.mrf.mxu0
  %v550 = vadd.f32 %v521, %v549
  %551 = vmatmul.f32.gmra.mxu0 %v426
  %v552 = vpop.f32.mrf.mxu0
  %v553 = vadd.f32 %v524, %v552
  %554 = vmatmul.f32.gmra.mxu0 %v427
  %v555 = vpop.f32.mrf.mxu0
  %v556 = vadd.f32 %v527, %v555
  %557 = vdwg.mxu0
  %558 = vmatpush.msra.mxu0 %v499
  %559 = vmatpush.msra.mxu0 %v498
  %560 = vmatpush.msra.mxu0 %v497
  %561 = vmatpush.msra.mxu0 %v496
  %562 = vmatpush.msra.mxu0 %v495
  %563 = vmatpush.msra.mxu0 %v494
  %564 = vmatpush.msra.mxu0 %v493
  %565 = vmatpush.msra.mxu0 %v492
  %566 = vmatpush.msra.mxu0 %v491
  %567 = vmatpush.msra.mxu0 %v490
  %568 = vmatpush.msra.mxu0 %v489
  %569 = vmatpush.msra.mxu0 %v488
  %570 = vmatpush.msra.mxu0 %v487
  %571 = vmatpush.msra.mxu0 %v486
  %572 = vmatpush.msra.mxu0 %v485
  %573 = vmatpush.msra.mxu0 %v484
  %574 = vmatmul.f32.gmra.mxu0 %v448
  %v575 = vpop.f32.mrf.mxu0
  %v576 = vadd.f32 %v547, %v575
  %577 = vmatmul.f32.gmra.mxu0 %v449
  %v578 = vpop.f32.mrf.mxu0
  %v579 = vadd.f32 %v550, %v578
  %580 = vmatmul.f32.gmra.mxu0 %v450
  %v581 = vpop.f32.mrf.mxu0
  %v582 = vadd.f32 %v553, %v581
  %583 = vmatmul.f32.gmra.mxu0 %v451
  %v584 = vpop.f32.mrf.mxu0
  %v585 = vadd.f32 %v556, %v584
  %586 = vdwg.mxu0
  %v587 = vld [vmem:[%s5] sm:$0x1]
  %v588 = vld [vmem:[%s6] sm:$0x1]
  %v589 = vmul.f32 %v576, %v576
  %v590 = vmul.f32 %v579, %v579
  %v591 = vmul.f32 %v582, %v582
  %v592 = vmul.f32 %v585, %v585
  %v593 = vadd.f32 %v576, %v579
  %v594 = vrot.slane %v593, 4
  %v595 = vadd.f32 %v593, %v594
  %v596 = vrot.slane %v595, 2
  %v597 = vadd.f32 %v595, %v596
  %v598 = vrot.slane %v597, 1
  %v599 = vadd.f32 %v597, %v598
  %v600 = vadd.f32 %v589, %v590
  %v601 = vrot.slane %v600, 4
  %v602 = vadd.f32 %v600, %v601
  %v603 = vrot.slane %v602, 2
  %v604 = vadd.f32 %v602, %v603
  %v605 = vrot.slane %v604, 1
  %v606 = vadd.f32 %v604, %v605
  %v607 = vadd.f32 %v582, %v585
  %v608 = vrot.slane %v607, 4
  %v609 = vadd.f32 %v607, %v608
  %v610 = vrot.slane %v609, 2
  %v611 = vadd.f32 %v609, %v610
  %v612 = vrot.slane %v611, 1
  %v613 = vadd.f32 %v611, %v612
  %v614 = vadd.f32 %v591, %v592
  %v615 = vrot.slane %v614, 4
  %v616 = vadd.f32 %v614, %v615
  %v617 = vrot.slane %v616, 2
  %v618 = vadd.f32 %v616, %v617
  %v619 = vrot.slane %v618, 1
  %v620 = vadd.f32 %v618, %v619
  %v625 = vsel %vm278, %v613, %v599
  %v626 = vsel %vm278, %v620, %v606
  %629 = vmatpush.msra.mxu0 %v51
  %630 = vmatpush.msra.mxu0 %v50
  %631 = vmatpush.msra.mxu0 %v49
  %632 = vmatpush.msra.mxu0 %v48
  %633 = vmatpush.msra.mxu0 %v47
  %634 = vmatpush.msra.mxu0 %v46
  %635 = vmatpush.msra.mxu0 %v45
  %636 = vmatpush.msra.mxu0 %v44
  %637 = vmatpush.msra.mxu0 %v43
  %638 = vmatpush.msra.mxu0 %v42
  %639 = vmatpush.msra.mxu0 %v41
  %640 = vmatpush.msra.mxu0 %v40
  %641 = vmatpush.msra.mxu0 %v39
  %642 = vmatpush.msra.mxu0 %v38
  %643 = vmatpush.msra.mxu0 %v37
  %644 = vmatpush.msra.mxu0 %v36
  %645 = vmatmul.f32.gmra.mxu0 %v625
  %v646 = vpop.f32.mrf.mxu0
  %v647 = vadd.f32 0.0, %v646
  %648 = vdwg.mxu0
  %649 = vmatpush.msra.mxu0 %v67
  %650 = vmatpush.msra.mxu0 %v66
  %651 = vmatpush.msra.mxu0 %v65
  %652 = vmatpush.msra.mxu0 %v64
  %653 = vmatpush.msra.mxu0 %v63
  %654 = vmatpush.msra.mxu0 %v62
  %655 = vmatpush.msra.mxu0 %v61
  %656 = vmatpush.msra.mxu0 %v60
  %657 = vmatpush.msra.mxu0 %v59
  %658 = vmatpush.msra.mxu0 %v58
  %659 = vmatpush.msra.mxu0 %v57
  %660 = vmatpush.msra.mxu0 %v56
  %661 = vmatpush.msra.mxu0 %v55
  %662 = vmatpush.msra.mxu0 %v54
  %663 = vmatpush.msra.mxu0 %v53
  %664 = vmatpush.msra.mxu0 %v52
  %665 = vmatmul.f32.gmra.mxu0 %v626
  %v666 = vpop.f32.mrf.mxu0
  %v667 = vadd.f32 %v647, %v666
  %668 = vdwg.mxu0
  %v669 = vmul.f32 %v667, 0.00390625
  %v670 = vmul.f32 %v669, %v669
  %672 = vrot.lane.b32.xlu0 %v670, 8
  %v673 = vpop.permute.xlu0 %672
  %v675 = vsub.f32 %v669, %v673
  %v676 = vadd.f32 %v675, 1e-05
  %v677 = vrsqrt.pop %v676
  %v678 = vmul.f32 %v677, %v676
  %v679 = vmul.f32 %v678, %v677
  %v680 = vmul.f32 0.5, %v679
  %v681 = vsub.f32 1.5, %v680
  %v682 = vmul.f32 %v677, %v681
  %vm683 = vweird.f32 %v676
  %vm684 = vweird.f32 %v677
  %vm685 = vmor %vm683, %vm684
  %v686 = vsel %vm685, %v677, %v682
  %v688 = vperm.slane %v587, 0
  %691 = vrot.lane.b32.xlu0 %v686, 120
  %v692 = vpop.permute.xlu0 %691
  %v694 = vmul.f32 %v688, %v692
  %v695 = vmul.f32 %v669, %v694
  %v697 = vperm.slane %v588, 0
  %v699 = vsub.f32 %v697, %v695
  %701 = vrot.lane.b32.xlu0 %v699, 8
  %v702 = vpop.permute.xlu0 %701
  %v704 = vsel %vm358, %v694, %v702
  %v706 = vsel %vm360, %v704, 0
  %708 = vmatpush.msra.mxu0 0.0
  %709 = vmatpush.msra.mxu0 0.0
  %710 = vmatpush.msra.mxu0 0.0
  %711 = vmatpush.msra.mxu0 0.0
  %712 = vmatpush.msra.mxu0 0.0
  %713 = vmatpush.msra.mxu0 0.0
  %714 = vmatpush.msra.mxu0 0.0
  %715 = vmatpush.msra.mxu0 0.0
  %716 = vmatpush.msra.mxu0 0.0
  %717 = vmatpush.msra.mxu0 0.0
  %718 = vmatpush.msra.mxu0 0.0
  %719 = vmatpush.msra.mxu0 0.0
  %720 = vmatpush.msra.mxu0 0.0
  %721 = vmatpush.msra.mxu0 0.0
  %722 = vmatpush.msra.mxu0 %v70
  %723 = vmatpush.msra.mxu0 %v68
  %724 = vmatmul.f32.gmra.mxu0 %v706
  %v725 = vpop.f32.mrf.mxu0
  %v726 = vadd.f32 0.0, %v725
  %727 = vdwg.mxu0
  %728 = vmatpush.msra.mxu0 0.0
  %729 = vmatpush.msra.mxu0 0.0
  %730 = vmatpush.msra.mxu0 0.0
  %731 = vmatpush.msra.mxu0 0.0
  %732 = vmatpush.msra.mxu0 0.0
  %733 = vmatpush.msra.mxu0 0.0
  %734 = vmatpush.msra.mxu0 0.0
  %735 = vmatpush.msra.mxu0 0.0
  %736 = vmatpush.msra.mxu0 0.0
  %737 = vmatpush.msra.mxu0 0.0
  %738 = vmatpush.msra.mxu0 0.0
  %739 = vmatpush.msra.mxu0 0.0
  %740 = vmatpush.msra.mxu0 0.0
  %741 = vmatpush.msra.mxu0 0.0
  %742 = vmatpush.msra.mxu0 %v71
  %743 = vmatpush.msra.mxu0 %v69
  %744 = vmatmul.f32.gmra.mxu0 %v706
  %v745 = vpop.f32.mrf.mxu0
  %v746 = vadd.f32 0.0, %v745
  %747 = vdwg.mxu0
  %v749 = vrot.slane %v726, 1
  %v751 = vrot.slane %v746, 1
  %v752 = vperm.slane %v726, 0
  %v753 = vperm.slane %v749, 0
  %v756 = vmul.f32 %v576, %v752
  %v757 = vmul.f32 %v579, %v752
  %v758 = vmul.f32 %v582, %v753
  %v759 = vmul.f32 %v585, %v753
  %v760 = vperm.slane %v746, 0
  %v761 = vperm.slane %v751, 0
  %v764 = vadd.f32 %v756, %v760
  %v765 = vadd.f32 %v757, %v760
  %v766 = vadd.f32 %v758, %v761
  %v767 = vadd.f32 %v759, %v761
  %v768 = vadd.f32 %v32, %v764
  %v769 = vadd.f32 %v33, %v765
  %v770 = vadd.f32 %v34, %v766
  %v771 = vadd.f32 %v35, %v767
  %772 = vst [vmem:[%s9] sm:$0xff] %v768
  %773 = vst [vmem:[%s9 + $0x8] sm:$0xff] %v769
  %774 = vst [vmem:[%s9 + $0x10] sm:$0xff] %v770
  %775 = vst [vmem:[%s9 + $0x18] sm:$0xff] %v771
  // Predicated region
  $region38: #{residual_block_forward.1} parent=0 // pred_check
    _
  $region39: #{residual_block_forward.1} parent=0 // pred_check_branch
    %777 = sbr.rel (0) target = $region41
  $region40: #{residual_block_forward.1} parent=0 // pred_region
    _
  $region41: #{residual_block_forward.1} parent=0 // pred_fallthru
    _
  // Predicated region
  $region42: #{residual_block_forward.1} parent=0 // pred_check
    _
  $region43: #{residual_block_forward.1} parent=0 // pred_check_branch
    %779 = sbr.rel (0) target = $region45
  $region44: #{residual_block_forward.1} parent=0 // pred_region
    _
  $region45: #{residual_block_forward.1} parent=0 // pred_fallthru
    _

</llo_original>
